<compile_context>
chip_gen: v6e
topology: v6e:2x2x1
jax: 0.10.0
libtpu: 0.0.40
codegen_flags: <defaults>
</compile_context>

<pallas_src>
import math

import jax
import jax.numpy as jnp
from jax.experimental import pallas as pl
from jax.experimental.pallas import tpu as pltpu


def _round_up(v, m):
    return -(-v // m) * m


def _cdiv(a, b):
    return -(-a // b)


# ----------------------------- kernels ------------------------------------ #
# W^T is built once in the wrapper; every kernel body is a single MXU matmul
# (f32 accumulation) plus an optional bias add.

def _matmul_kernel(x_ref, wt_ref, o_ref):
    o_ref[...] = jnp.dot(
        x_ref[...], wt_ref[...],
        preferred_element_type=jnp.float32).astype(o_ref.dtype)


def _matmul_bias_kernel(x_ref, wt_ref, bias_ref, o_ref):
    acc = jnp.dot(x_ref[...], wt_ref[...], preferred_element_type=jnp.float32)
    o_ref[...] = (acc + bias_ref[...]).astype(o_ref.dtype)


# K-tiled fallback (P3 accumulator pattern) for very large K, where even a
# single (K, tn) weight column block would not fit the VMEM budget.

def _matmul_kernel_ktiled(x_ref, wt_ref, o_ref, acc_ref):
    @pl.when(pl.program_id(2) == 0)
    def _():
        acc_ref[...] = jnp.zeros_like(acc_ref)

    acc_ref[...] += jnp.dot(x_ref[...], wt_ref[...],
                            preferred_element_type=jnp.float32)

    @pl.when(pl.program_id(2) == pl.num_programs(2) - 1)
    def _():
        o_ref[...] = acc_ref[...].astype(o_ref.dtype)


def _matmul_bias_kernel_ktiled(x_ref, wt_ref, bias_ref, o_ref, acc_ref):
    @pl.when(pl.program_id(2) == 0)
    def _():
        acc_ref[...] = jnp.zeros_like(acc_ref)

    acc_ref[...] += jnp.dot(x_ref[...], wt_ref[...],
                            preferred_element_type=jnp.float32)

    @pl.when(pl.program_id(2) == pl.num_programs(2) - 1)
    def _():
        o_ref[...] = (acc_ref[...] + bias_ref[...]).astype(o_ref.dtype)


# ----------------------------- wrapper ------------------------------------ #

def kron_linear_forward(x, A, B, bias, *, block_m=512, block_n=512,
                        compute_dtype=jnp.bfloat16, vmem_budget_bytes=None):
    """Pallas equivalent of TritonKroneckerLinear.forward.

    Y = X @ kron(A, B).T + bias
      X: (M, K), A: (A_N, A_K), B: (B_N, B_K), K = A_K*B_K, N = A_N*B_N.

    compute_dtype: matmul operand dtype (accumulation is always f32).
      Default bfloat16 (MXU-rate, half the DMA bytes); pass jnp.float32 for
      exact-reference numerics.
    vmem_budget_bytes: override the derived per-core VMEM budget (used mainly
      to exercise the fallback tilings in tests).
    """
    M, K = x.shape
    A_N, A_K = A.shape
    B_N, B_K = B.shape
    if A_K * B_K != K:
        raise ValueError("in_factors must multiply to in_features")
    N = A_N * B_N
    out_dtype = x.dtype
    has_bias = bias is not None

    # Grid-invariant Kronecker expansion, built once by XLA (tiny vs the GEMM).
    # TODO(synk): two-factor path (contract B_K then A_K) for very large factors.
    w_t = jnp.kron(A.astype(jnp.float32), B.astype(jnp.float32)).T   # (K, N)

    cdt = jnp.dtype(compute_dtype) if compute_dtype is not None else jnp.dtype(x.dtype)
    bpe = cdt.itemsize
    out_bpe = jnp.dtype(out_dtype).itemsize
    x_c = x.astype(cdt)                     # no row padding of X (no HBM copy)
    w_t = w_t.astype(cdt)

    # --------------- generation-aware VMEM budget --------------- #
    if vmem_budget_bytes is None:
        try:
            vmem_cap = int(pltpu.get_tpu_info().vmem_capacity_bytes)
        except Exception:
            vmem_cap = 64 << 20             # conservative: v7x per-TC VMEM
        vmem_budget = (vmem_cap * 3) // 4   # ~75%: headroom for Mosaic scratch
    else:
        vmem_budget = int(vmem_budget_bytes)

    # --------------- row tile (trailing partial block is masked) --------------- #
    # Sub-32-bit dtypes pack rows into sublanes: bf16 -> 16-row multiples, etc.
    sublane = 8 * max(1, 4 // bpe)
    if M >= block_m:
        tm = block_m
    elif M >= sublane:
        nblk = 1 if M % sublane == 0 else 2
        tm = _round_up(_cdiv(M, nblk), sublane)
        if tm > M:
            tm = (M // sublane) * sublane
    else:
        tm = sublane                        # tiny batch: one masked block
    grid_m = _cdiv(M, tm)

    # --------------- column / K tiling decision --------------- #
    n_base = _round_up(N, 128)              # lane-dense output columns

    def footprint(tm_, tn_, tk_, w_cols):
        f = 2 * tm_ * tk_ * bpe             # x tile       (double-buffered)
        f += 2 * tk_ * w_cols * bpe         # W^T tile(s)  (double-buffered)
        f += 2 * tm_ * tn_ * out_bpe        # output tile  (double-buffered)
        f += tm_ * tn_ * 4                  # f32 matmul result / accumulator
        if has_bias:
            f += 2 * tn_ * 4
        return f

    mode = None
    tn, n_pad, tk = n_base, n_base, K

    # Mode A: whole W^T resident (grid-invariant block -> one DMA total).
    if footprint(tm, n_base, K, n_base) <= vmem_budget:
        mode = "whole_w"
    else:
        # Mode B: wide lane-dense column blocks, N-outer grid so each (K, tn)
        # weight block stays resident across all M tiles.
        tn_cands = [c for c in (512, 384, 256) if c <= block_n]
        if tn_cands:
            first = min(tn_cands,
                        key=lambda c: (_round_up(n_base, c) - n_base, -c))
            tn_cands = [first] + [c for c in (256, 128) if c < first]
        else:
            tn_cands = [128]
        for tn_try in tn_cands:
            if footprint(tm, tn_try, K, tn_try) <= vmem_budget:
                mode, tn = "col_resident", tn_try
                n_pad = _round_up(n_base, tn_try)
                break

    if mode is None:
        # Mode C: K-tiled accumulator (very large K, e.g. v7x 64 MiB VMEM).
        mode, tn, n_pad = "k_tiled", 128, n_base
        k_cap = _round_up(K, 128)
        tk = None
        for tk_try in (2048, 1024, 512, 256, 128):
            if tk_try <= k_cap and footprint(tm, tn, tk_try, tn) <= vmem_budget:
                tk = tk_try
                break
        while tk is None and tm > sublane:
            tm = max(sublane, (tm // 2) // sublane * sublane)
            for tk_try in (512, 256, 128):
                if tk_try <= k_cap and footprint(tm, tn, tk_try, tn) <= vmem_budget:
                    tk = tk_try
                    break
        if tk is None:
            tk = 128                        # last resort
        grid_m = _cdiv(M, tm)

    # --------------- padding (weights / bias columns, K for mode C) --------------- #
    if n_pad != N:
        w_t = jnp.pad(w_t, ((0, 0), (0, n_pad - N)))
    bias2d = None
    if has_bias:
        bias2d = bias.reshape(1, N).astype(jnp.float32)
        if n_pad != N:
            bias2d = jnp.pad(bias2d, ((0, 0), (0, n_pad - N)))
    k_pad = K
    if mode == "k_tiled":
        k_pad = _round_up(K, tk)
        if k_pad != K:
            # zero padding keeps the extra reduction terms exactly zero
            x_c = jnp.pad(x_c, ((0, 0), (0, k_pad - K)))
            w_t = jnp.pad(w_t, ((0, k_pad - K), (0, 0)))

    # --------------- grid / specs --------------- #
    if mode == "whole_w":
        grid = (grid_m,)
        x_spec = pl.BlockSpec((tm, K), lambda i: (i, 0))
        w_spec = pl.BlockSpec((K, n_pad), lambda i: (0, 0))   # invariant -> 1 DMA
        out_spec = pl.BlockSpec((tm, n_pad), lambda i: (i, 0))
        b_spec = pl.BlockSpec((1, n_pad), lambda i: (0, 0))
        dims = ("parallel",)
        kern = _matmul_bias_kernel if has_bias else _matmul_kernel
        scratch = []
        fp = footprint(tm, n_pad, K, n_pad)
    elif mode == "col_resident":
        grid = (n_pad // tn, grid_m)        # N outer, M inner: weight resident
        x_spec = pl.BlockSpec((tm, K), lambda j, i: (i, 0))
        w_spec = pl.BlockSpec((K, tn), lambda j, i: (0, j))
        out_spec = pl.BlockSpec((tm, tn), lambda j, i: (i, j))
        b_spec = pl.BlockSpec((1, tn), lambda j, i: (0, j))
        dims = ("parallel", "parallel")
        kern = _matmul_bias_kernel if has_bias else _matmul_kernel
        scratch = []
        fp = footprint(tm, tn, K, tn)
    else:  # "k_tiled"
        grid = (n_pad // tn, grid_m, k_pad // tk)
        x_spec = pl.BlockSpec((tm, tk), lambda j, i, k: (i, k))
        w_spec = pl.BlockSpec((tk, tn), lambda j, i, k: (k, j))
        out_spec = pl.BlockSpec((tm, tn), lambda j, i, k: (i, j))
        b_spec = pl.BlockSpec((1, tn), lambda j, i, k: (0, j))
        dims = ("parallel", "parallel", "arbitrary")
        kern = _matmul_bias_kernel_ktiled if has_bias else _matmul_kernel_ktiled
        scratch = [pltpu.VMEM((tm, tn), jnp.float32)]
        fp = footprint(tm, tn, tk, tn)

    in_specs = [x_spec, w_spec]
    inputs = [x_c, w_t]
    if has_bias:
        in_specs.append(b_spec)
        inputs.append(bias2d)

    cp_kwargs = dict(dimension_semantics=dims)
    need = fp + fp // 4
    if need > (16 << 20):                   # above v5e's scoped default
        cp_kwargs["vmem_limit_bytes"] = int(max(need, 32 << 20))

    out = pl.pallas_call(
        kern,
        out_shape=jax.ShapeDtypeStruct((M, n_pad), out_dtype),
        grid_spec=pltpu.PrefetchScalarGridSpec(
            num_scalar_prefetch=0,
            grid=grid,
            in_specs=in_specs,
            out_specs=out_spec,
            scratch_shapes=scratch,
        ),
        compiler_params=pltpu.CompilerParams(**cp_kwargs),
    )(*inputs)

    if n_pad != N:
        out = out[:, :N]
    return out


# ----------------------------- module port --------------------------------- #

class PallasKroneckerLinear:
    """JAX/Pallas port of TritonKroneckerLinear (forward only)."""

    def __init__(self, in_features, out_features, in_factors, out_factors,
                 bias=True, key=None, compute_dtype=jnp.bfloat16):
        assert in_factors[0] * in_factors[1] == in_features
        assert out_factors[0] * out_factors[1] == out_features
        self.in_features = in_features
        self.out_features = out_features
        self.compute_dtype = compute_dtype
        if key is None:
            key = jax.random.PRNGKey(0)
        k_a, k_b, k_bias = jax.random.split(key, 3)

        # Deterministic init mirroring kaiming_uniform_(a=sqrt(5)):
        # bound = 1/sqrt(fan_in), fan_in = second dim of each factor.
        out_f1, out_f2 = out_factors
        in_f1, in_f2 = in_factors
        bound_a = 1.0 / math.sqrt(in_f1)
        bound_b = 1.0 / math.sqrt(in_f2)
        self.kn_factor_A = jax.random.uniform(
            k_a, (out_f1, in_f1), jnp.float32, -bound_a, bound_a)
        self.kn_factor_B = jax.random.uniform(
            k_b, (out_f2, in_f2), jnp.float32, -bound_b, bound_b)
        if bias:
            bound = 1.0 / math.sqrt(in_features)
            self.bias = jax.random.uniform(
                k_bias, (out_features,), jnp.float32, -bound, bound)
        else:
            self.bias = None

    def __call__(self, x):
        return kron_linear_forward(x, self.kn_factor_A, self.kn_factor_B,
                                   self.bias, compute_dtype=self.compute_dtype)


# ----------------------------- demo / check -------------------------------- #

if __name__ == "__main__":
    key = jax.random.PRNGKey(0)
    k_x1, k_p1, k_x2, k_p2, k_x3, k_p3 = jax.random.split(key, 6)

    # Case 1: exact-numerics path (f32 compute). N padded 32 -> 128 for
    # lane-dense stores, whole W^T resident, single grid step.
    M1, in1, out1 = 64, 32, 32
    layer1 = PallasKroneckerLinear(in1, out1, (8, 4), (8, 4), bias=True,
                                   key=k_p1, compute_dtype=jnp.float32)
    x1 = jax.random.normal(k_x1, (M1, in1), dtype=jnp.float32)
    y1 = jax.block_until_ready(layer1(x1))
    W1 = jnp.kron(layer1.kn_factor_A, layer1.kn_factor_B)
    ref1 = x1 @ W1.T + layer1.bias[None, :]
    assert y1.shape == (M1, out1)
    assert jnp.allclose(y1, ref1, rtol=1e-4, atol=1e-4), (
        float(jnp.max(jnp.abs(y1 - ref1))))

    # Case 2: default bf16 compute, un-padded M=300 (160-row tiles, masked
    # tail), whole resident W^T (K=64, N=1024), no bias.  bf16 operands with
    # f32 accumulation -> looser tolerance vs the f32 reference (expected).
    M2, in2, out2 = 300, 64, 1024
    layer2 = PallasKroneckerLinear(in2, out2, (8, 8), (32, 32),
                                   bias=False, key=k_p2)
    x2 = jax.random.normal(k_x2, (M2, in2), dtype=jnp.float32)
    y2 = jax.block_until_ready(layer2(x2))
    W2 = jnp.kron(layer2.kn_factor_A, layer2.kn_factor_B)
    ref2 = x2 @ W2.T
    assert y2.shape == (M2, out2)
    assert jnp.allclose(y2, ref2, rtol=5e-2, atol=5e-2), (
        float(jnp.max(jnp.abs(y2 - ref2))))

    # Cases 3 & 4: exercise the fallback tilings at small shapes by forcing a
    # tiny VMEM budget (column-resident weight, then K-tiled accumulator).
    M3, in3, out3 = 128, 256, 256
    layer3 = PallasKroneckerLinear(in3, out3, (16, 16), (16, 16),
                                   bias=True, key=k_p3)
    x3 = jax.random.normal(k_x3, (M3, in3), dtype=jnp.float32)
    W3 = jnp.kron(layer3.kn_factor_A, layer3.kn_factor_B)
    ref3 = x3 @ W3.T + layer3.bias[None, :]
    y3 = jax.block_until_ready(kron_linear_forward(
        x3, layer3.kn_factor_A, layer3.kn_factor_B, layer3.bias,
        vmem_budget_bytes=600 * 1024))      # -> "col_resident" (N-outer grid)
    y4 = jax.block_until_ready(kron_linear_forward(
        x3, layer3.kn_factor_A, layer3.kn_factor_B, layer3.bias,
        vmem_budget_bytes=360 * 1024))      # -> "k_tiled" (accumulator)
    assert y3.shape == (M3, out3) and y4.shape == (M3, out3)
    assert jnp.allclose(y3, ref3, rtol=5e-2, atol=5e-2), (
        float(jnp.max(jnp.abs(y3 - ref3))))
    assert jnp.allclose(y4, ref3, rtol=5e-2, atol=5e-2), (
        float(jnp.max(jnp.abs(y4 - ref3))))

    print("KERNEL_OK")
</pallas_src>

<mosaic_0001>
module attributes {stable_mosaic.version = 11 : i64} {
  func.func @_matmul_bias_kernel(%arg0: i32, %arg1: memref<64x32xf32, #tpu.memory_space<vmem>>, %arg2: memref<32x128xf32, #tpu.memory_space<vmem>>, %arg3: memref<1x128xf32, #tpu.memory_space<vmem>>, %arg4: memref<64x128xf32, #tpu.memory_space<vmem>>) attributes {dimension_semantics = [#tpu.dimension_semantics<parallel>], iteration_bounds = array<i64: 1>, scalar_prefetch = 0 : i64, scratch_operands = 0 : i64, tpu.core_type = #tpu.core_type<tc>, window_params = [{transform_indices = @transform_0, window_bounds = array<i64: 64, 32>}, {pipeline_mode = #tpu.pipeline_mode<synchronous>, transform_indices = @transform_1, window_bounds = array<i64: 32, 128>}, {pipeline_mode = #tpu.pipeline_mode<synchronous>, transform_indices = @transform_2, window_bounds = array<i64: 1, 128>}, {transform_indices = @transform_3, window_bounds = array<i64: 64, 128>}]} {
    %c0 = arith.constant 0 : index
    %c0_0 = arith.constant 0 : index
    %0 = vector.load %arg1[%c0, %c0_0] : memref<64x32xf32, #tpu.memory_space<vmem>>, vector<64x32xf32>
    %c0_1 = arith.constant 0 : index
    %c0_2 = arith.constant 0 : index
    %1 = vector.load %arg2[%c0_1, %c0_2] : memref<32x128xf32, #tpu.memory_space<vmem>>, vector<32x128xf32>
    %cst = arith.constant dense<0.000000e+00> : vector<64x128xf32>
    %2 = tpu.matmul %0, %1, %cst {dimension_numbers = #tpu.dot_dimension_numbers<[1], [0], [0], [1], [0, 0, 1, 1], [], []>} : vector<64x32xf32>, vector<32x128xf32>, vector<64x128xf32> -> vector<64x128xf32>
    %c0_3 = arith.constant 0 : index
    %c0_4 = arith.constant 0 : index
    %3 = vector.load %arg3[%c0_3, %c0_4] : memref<1x128xf32, #tpu.memory_space<vmem>>, vector<1x128xf32>
    %4 = vector.broadcast %3 : vector<1x128xf32> to vector<64x128xf32>
    %5 = arith.addf %2, %4 : vector<64x128xf32>
    %c0_5 = arith.constant 0 : index
    %c0_6 = arith.constant 0 : index
    %6 = vector.load %arg4[%c0_5, %c0_6] : memref<64x128xf32, #tpu.memory_space<vmem>>, vector<64x128xf32>
    tpu.vector_store %arg4[%c0_5, %c0_6], %5 {strides = array<i32>} : memref<64x128xf32, #tpu.memory_space<vmem>>, vector<64x128xf32>,
    return
  }
  func.func @transform_0(%arg0: i32) -> (i32, i32) {
    %c0_i32 = arith.constant 0 : i32
    %c0_i32_0 = arith.constant 0 : i32
    return %arg0, %c0_i32 : i32, i32
  }
  func.func @transform_1(%arg0: i32) -> (i32, i32) {
    %c0_i32 = arith.constant 0 : i32
    %c0_i32_0 = arith.constant 0 : i32
    %c0_i32_1 = arith.constant 0 : i32
    return %c0_i32, %c0_i32_0 : i32, i32
  }
  func.func @transform_2(%arg0: i32) -> (i32, i32) {
    %c0_i32 = arith.constant 0 : i32
    %c0_i32_0 = arith.constant 0 : i32
    %c0_i32_1 = arith.constant 0 : i32
    return %c0_i32, %c0_i32_0 : i32, i32
  }
  func.func @transform_3(%arg0: i32) -> (i32, i32) {
    %c0_i32 = arith.constant 0 : i32
    %c0_i32_0 = arith.constant 0 : i32
    return %arg0, %c0_i32 : i32, i32
  }
}

</mosaic_0001>

<llo_original>
// kernel: tpu_custom_call.1
$region0: #{tpu_custom_call.1}
  #allocation0 [shape = 'u32[]', space=smem, size = 0x4, offset = 0x4, fixed_abs, tag = 'smem constant byte address 0x4 - core index']
  #allocation1 [shape = 'u32[144,128]{1,0:T(1,128)}', space=vmem, size = 0x12000, scoped, tag = 'internal scratch']
  %s0 = inlined_call_operand.vmem [shape: f32[64,32], index: 0, kind: input, shape index: {}]
  %s1 = inlined_call_operand.vmem [shape: f32[32,128], index: 1, kind: input, shape index: {}]
  %s2 = inlined_call_operand.vmem [shape: f32[1,128], index: 2, kind: input, shape index: {}]
  %s3 = inlined_call_operand.hbm [shape: f32[64,128], index: 3, kind: output, shape index: {}]
  %s4 = sld [smem:[#allocation0]]
  $region22: #{tpu_custom_call.1} parent=0
    _
  %s6 = ssub.s32 1, %s4
  %s7 = scalar_select 0, %s6, %s4
  $region1: #{tpu_custom_call.1} parent=0
    #allocation2 [shape = 'u8[32768]{0}', space=vmem, size = 0x8000, scoped, tag = 'output window, operand 0, single buffered']
    #allocation3 [shape = 's32[1]{0}', space=sflag, size = 0x4, scoped, tag = 'scoped memory for tpu_custom_call.1']
    %8 = vsyncpa [#allocation3], 0
    // Predicated region
    $region2: #{tpu_custom_call.1} parent=1 // pred_check
      _
    $region3: #{tpu_custom_call.1} parent=1 // pred_check_branch
      %10 = sbr.rel (0) target = $region5
    $region4: #{tpu_custom_call.1} parent=1 // pred_region
      _
    $region5: #{tpu_custom_call.1} parent=1 // pred_fallthru
      _
    // Predicated region
    $region6: #{tpu_custom_call.1} parent=1 // pred_check
      _
    $region7: #{tpu_custom_call.1} parent=1 // pred_check_branch
      %12 = sbr.rel (0) target = $region9
    $region8: #{tpu_custom_call.1} parent=1 // pred_region
      _
    $region9: #{tpu_custom_call.1} parent=1 // pred_fallthru
      _
    // Predicated region
    $region10: #{tpu_custom_call.1} parent=1 // pred_check
      _
    $region11: #{tpu_custom_call.1} parent=1 // pred_check_branch
      %14 = sbr.rel (0) target = $region13
    $region12: #{tpu_custom_call.1} parent=1 // pred_region
      _
    $region13: #{tpu_custom_call.1} parent=1 // pred_fallthru
      _
    %v15 = vld [vmem:[%s0] sm:$0xff]
    %v16 = vld [vmem:[%s0 + $0x8] sm:$0xff]
    %v17 = vld [vmem:[%s0 + $0x10] sm:$0xff]
    %v18 = vld [vmem:[%s0 + $0x18] sm:$0xff]
    %v19 = vld [vmem:[%s0 + $0x20] sm:$0xff]
    %v20 = vld [vmem:[%s0 + $0x28] sm:$0xff]
    %v21 = vld [vmem:[%s0 + $0x30] sm:$0xff]
    %v22 = vld [vmem:[%s0 + $0x38] sm:$0xff]
    %v23 = vld [vmem:[%s1] sm:$0xff]
    %v24 = vld [vmem:[%s1 + $0x8] sm:$0xff]
    %v25 = vld [vmem:[%s1 + $0x10] sm:$0xff]
    %v26 = vld [vmem:[%s1 + $0x18] sm:$0xff]
    %v27 = vld [vmem:[%s2] sm:$0x1]
    %v29 = vlaneseq
    %v30 = vshrl.u32 %v29, 7
    %v31 = vsub.s32 0, %v30
    %v32 = vrot.slane %v27, %v31
    %vm34 = vcmask 261120
    %v36 = vsel %vm34, %v15, 0
    %v39 = vsel %vm34, %v16, 0
    %v42 = vsel %vm34, %v17, 0
    %v45 = vsel %vm34, %v18, 0
    %v48 = vsel %vm34, %v19, 0
    %v51 = vsel %vm34, %v20, 0
    %v54 = vsel %vm34, %v21, 0
    %v57 = vsel %vm34, %v22, 0
    %59 = vmatprep.subr.mxu0 0.0
    %60 = vmatpush1.msra.mxu0 0.0
    %61 = vmatprep.subr.mxu0 0.0
    %62 = vmatpush1.msra.mxu0 0.0
    %63 = vmatprep.subr.mxu0 0.0
    %64 = vmatpush1.msra.mxu0 0.0
    %65 = vmatprep.subr.mxu0 0.0
    %66 = vmatpush1.msra.mxu0 0.0
    %67 = vmatprep.subr.mxu0 0.0
    %68 = vmatpush1.msra.mxu0 0.0
    %69 = vmatprep.subr.mxu0 0.0
    %70 = vmatpush1.msra.mxu0 0.0
    %71 = vmatprep.subr.mxu0 0.0
    %72 = vmatpush1.msra.mxu0 0.0
    %73 = vmatprep.subr.mxu0 0.0
    %74 = vmatpush1.msra.mxu0 0.0
    %75 = vmatprep.subr.mxu0 0.0
    %76 = vmatpush1.msra.mxu0 0.0
    %77 = vmatprep.subr.mxu0 0.0
    %78 = vmatpush1.msra.mxu0 0.0
    %79 = vmatprep.subr.mxu0 0.0
    %80 = vmatpush1.msra.mxu0 0.0
    %81 = vmatprep.subr.mxu0 0.0
    %82 = vmatpush1.msra.mxu0 0.0
    %83 = vmatprep.subr.mxu0 0.0
    %84 = vmatpush1.msra.mxu0 %v26
    %85 = vmatprep.subr.mxu0 0.0
    %86 = vmatpush1.msra.mxu0 %v25
    %87 = vmatprep.subr.mxu0 0.0
    %88 = vmatpush1.msra.mxu0 %v24
    %89 = vmatprep.subr.mxu0 0.0
    %90 = vmatpush1.msra.mxu0 %v23
    %91 = vmatprep.subr.mxu0 0.0
    %92 = vmatpush2.msra.mxu0 0.0
    %93 = vmatprep.subr.mxu0 0.0
    %94 = vmatpush2.msra.mxu0 0.0
    %95 = vmatprep.subr.mxu0 0.0
    %96 = vmatpush2.msra.mxu0 0.0
    %97 = vmatprep.subr.mxu0 0.0
    %98 = vmatpush2.msra.mxu0 0.0
    %99 = vmatprep.subr.mxu0 0.0
    %100 = vmatpush2.msra.mxu0 0.0
    %101 = vmatprep.subr.mxu0 0.0
    %102 = vmatpush2.msra.mxu0 0.0
    %103 = vmatprep.subr.mxu0 0.0
    %104 = vmatpush2.msra.mxu0 0.0
    %105 = vmatprep.subr.mxu0 0.0
    %106 = vmatpush2.msra.mxu0 0.0
    %107 = vmatprep.subr.mxu0 0.0
    %108 = vmatpush2.msra.mxu0 0.0
    %109 = vmatprep.subr.mxu0 0.0
    %110 = vmatpush2.msra.mxu0 0.0
    %111 = vmatprep.subr.mxu0 0.0
    %112 = vmatpush2.msra.mxu0 0.0
    %113 = vmatprep.subr.mxu0 0.0
    %114 = vmatpush2.msra.mxu0 0.0
    %115 = vmatprep.subr.mxu0 0.0
    %116 = vmatpush2.msra.mxu0 0.0
    %117 = vmatprep.subr.mxu0 0.0
    %118 = vmatpush2.msra.mxu0 0.0
    %119 = vmatprep.subr.mxu0 0.0
    %120 = vmatpush2.msra.mxu0 0.0
    %121 = vmatprep.subr.mxu0 0.0
    %122 = vmatpush2.msra.mxu0 0.0
    %123 = vmatprep.mubr.f32.mxu0 0.0
    %124 = vmatmul.mubr.f32.gmra.mxu0 %v36
    %v125 = vpop.f32.mrf.mxu0
    %v126 = vadd.f32 %v32, %v125
    %v127 = vpop.f32.mrf.mxu0
    %128 = vmatprep.mubr.f32.mxu0 0.0
    %129 = vmatmul.mubr.f32.gmra.mxu0 %v39
    %v130 = vpop.f32.mrf.mxu0
    %v131 = vadd.f32 %v32, %v130
    %v132 = vpop.f32.mrf.mxu0
    %133 = vmatprep.mubr.f32.mxu0 0.0
    %134 = vmatmul.mubr.f32.gmra.mxu0 %v42
    %v135 = vpop.f32.mrf.mxu0
    %v136 = vadd.f32 %v32, %v135
    %v137 = vpop.f32.mrf.mxu0
    %138 = vmatprep.mubr.f32.mxu0 0.0
    %139 = vmatmul.mubr.f32.gmra.mxu0 %v45
    %v140 = vpop.f32.mrf.mxu0
    %v141 = vadd.f32 %v32, %v140
    %v142 = vpop.f32.mrf.mxu0
    %143 = vmatprep.mubr.f32.mxu0 0.0
    %144 = vmatmul.mubr.f32.gmra.mxu0 %v48
    %v145 = vpop.f32.mrf.mxu0
    %v146 = vadd.f32 %v32, %v145
    %v147 = vpop.f32.mrf.mxu0
    %148 = vmatprep.mubr.f32.mxu0 0.0
    %149 = vmatmul.mubr.f32.gmra.mxu0 %v51
    %v150 = vpop.f32.mrf.mxu0
    %v151 = vadd.f32 %v32, %v150
    %v152 = vpop.f32.mrf.mxu0
    %153 = vmatprep.mubr.f32.mxu0 0.0
    %154 = vmatmul.mubr.f32.gmra.mxu0 %v54
    %v155 = vpop.f32.mrf.mxu0
    %v156 = vadd.f32 %v32, %v155
    %v157 = vpop.f32.mrf.mxu0
    %158 = vmatprep.mubr.f32.mxu0 0.0
    %159 = vmatmul.mubr.f32.gmra.mxu0 %v57
    %v160 = vpop.f32.mrf.mxu0
    %v161 = vadd.f32 %v32, %v160
    %v162 = vpop.f32.mrf.mxu0
    %163 = vdwg.mxu0
    %164 = vst [vmem:[#allocation2] sm:$0xff] %v126
    %165 = vst [vmem:[#allocation2 + $0x8] sm:$0xff] %v131
    %166 = vst [vmem:[#allocation2 + $0x10] sm:$0xff] %v136
    %167 = vst [vmem:[#allocation2 + $0x18] sm:$0xff] %v141
    %168 = vst [vmem:[#allocation2 + $0x20] sm:$0xff] %v146
    %169 = vst [vmem:[#allocation2 + $0x28] sm:$0xff] %v151
    %170 = vst [vmem:[#allocation2 + $0x30] sm:$0xff] %v156
    %171 = vst [vmem:[#allocation2 + $0x38] sm:$0xff] %v161
    // Predicated region
    $region14: #{tpu_custom_call.1} parent=1 // pred_check
      _
    $region15: #{tpu_custom_call.1} parent=1 // pred_check_branch
      %173 = sbr.rel (0) target = $region17
    $region16: #{tpu_custom_call.1} parent=1 // pred_region
      %s175 = ssub.s32 1024, 1024
      %176 = vsyncadd [#allocation3], %s175
      %s177 = sshll.u32 [#allocation2], 4
      %s178 = int_to_ptr.vmem [resolvable:$true] %s177
      %183 = dma.vmem_to_hbm [thread:$0]  %s178, 1024, %s3, [#allocation3], 128, 128, 8
    $region17: #{tpu_custom_call.1} parent=1 // pred_fallthru
      _
    // Predicated region
    $region18: #{tpu_custom_call.1} parent=1 // pred_check
      _
    $region19: #{tpu_custom_call.1} parent=1 // pred_check_branch
      %185 = sbr.rel (0) target = $region21
    $region20: #{tpu_custom_call.1} parent=1 // pred_region
      %186 = dma.done [#allocation3], 1024
    $region21: #{tpu_custom_call.1} parent=1 // pred_fallthru
      _
    %187 = vsyncpa [#allocation3], 1

</llo_original>
